<compile_context>
chip_gen: v6e
topology: v6e:2x2x1
jax: 0.10.0
libtpu: 0.0.40
codegen_flags: <defaults>
</compile_context>

<pallas_src>
import jax
import jax.numpy as jnp
from jax.experimental import pallas as pl
from jax.experimental.pallas import tpu as pltpu


def mlp_kernel(x_ref, w1_ref, b1_ref, w2_ref, b2_ref, o_ref):
    # x_ref : (TB, D)   activations tile (f32 or bf16)
    # w1_ref: (D, H)    fc1 weight (resident across the grid)
    # b1_ref: (1, H)    fc1 bias (f32)
    # w2_ref: (1, H)    fc2 weight row (f32)
    # b2_ref: (1, 1)    fc2 bias, SMEM scalar
    # o_ref : (1, TB)   lane-dense output tile
    # fc1 on the MXU, f32 accumulation.
    h = jnp.dot(x_ref[...], w1_ref[...], preferred_element_type=jnp.float32)
    h = jnp.maximum(h + b1_ref[...], 0.0)
    # fc2 as VPU mul + XLU lane-reduce (avoids a 1-column MXU matmul).
    z = jnp.sum(h * w2_ref[...], axis=-1) + b2_ref[0, 0]      # (TB,)
    # Lane-dense store: (TB,) -> (1, TB).
    o_ref[...] = jax.nn.sigmoid(z)[None, :]


def simple_model_forward(x, w1, b1, w2, b2, *, block_b=128,
                         cast_matmul_to_bf16=False):
    """x: (B, D) f32; w1: (D, H); b1: (H,); w2: (H, 1); b2: (1,). Returns (B,) f32.

    block_b: batch tile (multiple of 128 keeps stores lane-dense; raise it for
    large B — per-step VMEM is tiny here, well under v7x's 64 MiB budget).
    """
    B, D = x.shape
    H = w1.shape[1]

    tb = int(block_b)
    num_tiles = pl.cdiv(B, tb)
    b_pad = num_tiles * tb

    # Pad the batch up to a tile multiple (padded rows are sliced away below).
    x_p = x if b_pad == B else jnp.pad(x, ((0, b_pad - B), (0, 0)))

    # Optional bf16 MXU operands (accumulation stays f32 inside the kernel).
    if cast_matmul_to_bf16:
        x_in = x_p.astype(jnp.bfloat16)
        w1_in = w1.astype(jnp.bfloat16)
    else:
        x_in = x_p
        w1_in = w1

    # Wrapper-side layout glue.
    b1_2d = b1.reshape(1, H).astype(jnp.float32)
    w2_row = w2.reshape(1, H).astype(jnp.float32)   # (H, 1) -> (1, H)
    b2_2d = b2.reshape(1, 1).astype(jnp.float32)    # SMEM scalar

    out = pl.pallas_call(
        mlp_kernel,
        out_shape=jax.ShapeDtypeStruct((1, b_pad), jnp.float32),
        grid=(num_tiles,),
        in_specs=[
            pl.BlockSpec((tb, D), lambda i: (i, 0)),   # x: tiled over batch
            pl.BlockSpec((D, H), lambda i: (0, 0)),    # w1: resident
            pl.BlockSpec((1, H), lambda i: (0, 0)),    # b1: resident
            pl.BlockSpec((1, H), lambda i: (0, 0)),    # w2 row: resident
            pl.BlockSpec(memory_space=pltpu.MemorySpace.SMEM),  # b2 scalar
        ],
        out_specs=pl.BlockSpec((1, tb), lambda i: (0, i)),      # lane-dense
        compiler_params=pltpu.CompilerParams(
            dimension_semantics=("parallel",),
        ),
    )(x_in, w1_in, b1_2d, w2_row, b2_2d)

    # (1, B_pad) -> (B,)  (torch.squeeze(x, -1) equivalent + drop padding).
    return out[0, :B]


if __name__ == "__main__":
    # Small shapes consistent with the module: input_size=32, hidden_size=64.
    batch = 200          # deliberately not a tile multiple -> exercises padding
    input_size = 32
    hidden_size = 64

    key = jax.random.PRNGKey(0)
    kx, kw1, kb1, kw2, kb2 = jax.random.split(key, 5)

    x = jax.random.normal(kx, (batch, input_size), dtype=jnp.float32)

    # Deterministic parameter init (roughly PyTorch Linear-style uniform).
    bound1 = 1.0 / (input_size ** 0.5)
    w1 = jax.random.uniform(kw1, (input_size, hidden_size),
                            minval=-bound1, maxval=bound1, dtype=jnp.float32)
    b1 = jax.random.uniform(kb1, (hidden_size,),
                            minval=-bound1, maxval=bound1, dtype=jnp.float32)

    bound2 = 1.0 / (hidden_size ** 0.5)
    w2 = jax.random.uniform(kw2, (hidden_size, 1),
                            minval=-bound2, maxval=bound2, dtype=jnp.float32)
    b2 = jax.random.uniform(kb2, (1,),
                            minval=-bound2, maxval=bound2, dtype=jnp.float32)

    # Pure-JAX reference.
    h_ref = jnp.maximum(x @ w1 + b1, 0.0)
    y_ref = jax.nn.sigmoid(h_ref @ w2 + b2)[:, 0]

    # f32 path (exact module semantics).
    y = simple_model_forward(x, w1, b1, w2, b2, block_b=128)
    jax.block_until_ready(y)
    assert y.shape == (batch,)
    assert jnp.allclose(y, y_ref, atol=1e-5, rtol=1e-5)

    # bf16-MXU path (v6e/v7x tuning knob): same kernel, looser tolerance.
    y_bf16 = simple_model_forward(x, w1, b1, w2, b2, block_b=128,
                                  cast_matmul_to_bf16=True)
    jax.block_until_ready(y_bf16)
    assert y_bf16.shape == (batch,)
    assert jnp.allclose(y_bf16, y_ref, atol=2e-2, rtol=2e-2)

    print("KERNEL_OK")
</pallas_src>

<mosaic_0001>
module attributes {stable_mosaic.version = 11 : i64} {
  func.func @mlp_kernel(%arg0: i32, %arg1: memref<128x32xf32, #tpu.memory_space<vmem>>, %arg2: memref<32x64xf32, #tpu.memory_space<vmem>>, %arg3: memref<1x64xf32, #tpu.memory_space<vmem>>, %arg4: memref<1x64xf32, #tpu.memory_space<vmem>>, %arg5: memref<1x1xf32, #tpu.memory_space<smem>>, %arg6: memref<1x128xf32, #tpu.memory_space<vmem>>) attributes {dimension_semantics = [#tpu.dimension_semantics<parallel>], iteration_bounds = array<i64: 2>, scalar_prefetch = 0 : i64, scratch_operands = 0 : i64, tpu.core_type = #tpu.core_type<tc>, window_params = [{transform_indices = @transform_0, window_bounds = array<i64: 128, 32>}, {pipeline_mode = #tpu.pipeline_mode<synchronous>, transform_indices = @transform_1, window_bounds = array<i64: 32, 64>}, {pipeline_mode = #tpu.pipeline_mode<synchronous>, transform_indices = @transform_2, window_bounds = array<i64: 1, 64>}, {pipeline_mode = #tpu.pipeline_mode<synchronous>, transform_indices = @transform_3, window_bounds = array<i64: 1, 64>}, {transform_indices = @transform_4, window_bounds = array<i64: 1, 1>}, {transform_indices = @transform_5, window_bounds = array<i64: 1, 128>}]} {
    %c0 = arith.constant 0 : index
    %c0_0 = arith.constant 0 : index
    %0 = vector.load %arg1[%c0, %c0_0] : memref<128x32xf32, #tpu.memory_space<vmem>>, vector<128x32xf32>
    %c0_1 = arith.constant 0 : index
    %c0_2 = arith.constant 0 : index
    %1 = vector.load %arg2[%c0_1, %c0_2] : memref<32x64xf32, #tpu.memory_space<vmem>>, vector<32x64xf32>
    %cst = arith.constant dense<0.000000e+00> : vector<128x64xf32>
    %2 = tpu.matmul %0, %1, %cst {dimension_numbers = #tpu.dot_dimension_numbers<[1], [0], [0], [1], [0, 0, 1, 1], [], []>} : vector<128x32xf32>, vector<32x64xf32>, vector<128x64xf32> -> vector<128x64xf32>
    %c0_3 = arith.constant 0 : index
    %c0_4 = arith.constant 0 : index
    %3 = vector.load %arg3[%c0_3, %c0_4] : memref<1x64xf32, #tpu.memory_space<vmem>>, vector<1x64xf32>
    %4 = vector.broadcast %3 : vector<1x64xf32> to vector<128x64xf32>
    %5 = arith.addf %2, %4 : vector<128x64xf32>
    %cst_5 = arith.constant 0.000000e+00 : f32
    %6 = vector.broadcast %cst_5 : f32 to vector<128x64xf32>
    %7 = arith.maximumf %5, %6 : vector<128x64xf32>
    %c0_6 = arith.constant 0 : index
    %c0_7 = arith.constant 0 : index
    %8 = vector.load %arg4[%c0_6, %c0_7] : memref<1x64xf32, #tpu.memory_space<vmem>>, vector<1x64xf32>
    %9 = vector.broadcast %8 : vector<1x64xf32> to vector<128x64xf32>
    %10 = arith.mulf %7, %9 : vector<128x64xf32>
    %cst_8 = arith.constant dense<0.000000e+00> : vector<128xf32>
    %11 = vector.multi_reduction <add>, %10, %cst_8 [1] : vector<128x64xf32> to vector<128xf32>
    %c0_9 = arith.constant 0 : index
    %c0_10 = arith.constant 0 : index
    %12 = memref.load %arg5[%c0_9, %c0_10] : memref<1x1xf32, #tpu.memory_space<smem>>
    %13 = vector.broadcast %12 : f32 to vector<128xf32>
    %14 = arith.addf %11, %13 : vector<128xf32>
    %15 = arith.negf %14 : vector<128xf32>
    %16 = math.exp %15 : vector<128xf32>
    %cst_11 = arith.constant 1.000000e+00 : f32
    %17 = vector.broadcast %cst_11 : f32 to vector<128xf32>
    %18 = arith.addf %17, %16 : vector<128xf32>
    %19 = arith.divf %17, %18 : vector<128xf32>
    %20 = vector.shape_cast %19 : vector<128xf32> to vector<1x128xf32>
    %c0_12 = arith.constant 0 : index
    %c0_13 = arith.constant 0 : index
    %21 = vector.load %arg6[%c0_12, %c0_13] : memref<1x128xf32, #tpu.memory_space<vmem>>, vector<1x128xf32>
    tpu.vector_store %arg6[%c0_12, %c0_13], %20 {strides = array<i32>} : memref<1x128xf32, #tpu.memory_space<vmem>>, vector<1x128xf32>,
    return
  }
  func.func @transform_0(%arg0: i32) -> (i32, i32) {
    %c0_i32 = arith.constant 0 : i32
    %c0_i32_0 = arith.constant 0 : i32
    return %arg0, %c0_i32 : i32, i32
  }
  func.func @transform_1(%arg0: i32) -> (i32, i32) {
    %c0_i32 = arith.constant 0 : i32
    %c0_i32_0 = arith.constant 0 : i32
    %c0_i32_1 = arith.constant 0 : i32
    return %c0_i32, %c0_i32_0 : i32, i32
  }
  func.func @transform_2(%arg0: i32) -> (i32, i32) {
    %c0_i32 = arith.constant 0 : i32
    %c0_i32_0 = arith.constant 0 : i32
    %c0_i32_1 = arith.constant 0 : i32
    return %c0_i32, %c0_i32_0 : i32, i32
  }
  func.func @transform_3(%arg0: i32) -> (i32, i32) {
    %c0_i32 = arith.constant 0 : i32
    %c0_i32_0 = arith.constant 0 : i32
    %c0_i32_1 = arith.constant 0 : i32
    return %c0_i32, %c0_i32_0 : i32, i32
  }
  func.func @transform_4(%arg0: i32) -> (i32, i32) {
    %c0_i32 = arith.constant 0 : i32
    %c0_i32_0 = arith.constant 0 : i32
    %c0_i32_1 = arith.constant 0 : i32
    return %c0_i32, %c0_i32_0 : i32, i32
  }
  func.func @transform_5(%arg0: i32) -> (i32, i32) {
    %c0_i32 = arith.constant 0 : i32
    %c0_i32_0 = arith.constant 0 : i32
    return %c0_i32, %arg0 : i32, i32
  }
}

</mosaic_0001>

<llo_original>
// kernel: tpu_custom_call.1
$region0: #{tpu_custom_call.1}
  #allocation0 [shape = 'u32[]', space=smem, size = 0x4, offset = 0x4, fixed_abs, tag = 'smem constant byte address 0x4 - core index']
  #allocation1 [shape = 'u32[144,128]{1,0:T(1,128)}', space=vmem, size = 0x12000, scoped, tag = 'internal scratch']
  #allocation2 [shape = 'f32[1,1]{1,0:T(1,128)S(6)}', space=smem, size = 0x200, scoped, tag = 'scoped memory for tpu_custom_call.1']
  %s0 = inlined_call_operand.vmem [shape: f32[256,32], index: 0, kind: input, shape index: {}]
  %s1 = inlined_call_operand.vmem [shape: f32[32,64], index: 1, kind: input, shape index: {}]
  %s2 = inlined_call_operand.vmem [shape: f32[1,64], index: 2, kind: input, shape index: {}]
  %s3 = inlined_call_operand.vmem [shape: f32[1,64], index: 3, kind: input, shape index: {}]
  %s4 = inlined_call_operand.<no memory space> [shape: f32[1,1], index: 4, kind: input, shape index: {}]
  %s5 = inlined_call_operand.hbm [shape: f32[1,256], index: 5, kind: output, shape index: {}]
  %s6 = sld [smem:[#allocation0]]
  $region53: #{tpu_custom_call.1} parent=0
    _
  %s8 = ssub.s32 1, %s6
  %s9 = scalar_select 0, %s8, %s6
  %10 = sst [smem:[#allocation2]] %s4
  $region1: #{tpu_custom_call.1} parent=0
    #allocation3 [shape = 'u8[1024]{0}', space=vmem, size = 0x400, scoped, tag = 'output window, operand 0']
    #allocation4 [shape = 's32[2]{0}', space=sflag, size = 0x8, scoped, tag = 'scoped memory for tpu_custom_call.1']
    %11 = vsyncpa [#allocation4], 0
    %s12 = scalar_lea.sflag [#allocation4], 1
    %13 = vsyncpa %s12, 0
    loop: start=0, step=1, limit=4
    $region2: #{tpu_custom_call.1} parent=1 // loop_pre_header
      _
    $region3: #{tpu_custom_call.1} parent=1 // loop_header
      %s15 = sphi 0, %s19
      %p16 = scmp.ge.s32.totalorder %s15, 4
      %s25 = sphi 0, %s27
      %s28 = sphi 0, %s25
      %s29 = sphi 0, %s28
      %s45 = sphi 0, %s29
      %s49 = sphi 0, %s49
      %s51 = sphi 0, %s49
      %s52 = sphi 0, %s51
      %s66 = sphi 0, %s52
      %s70 = sphi 0, %s70
      %s72 = sphi 0, %s70
      %s73 = sphi 0, %s72
      %s87 = sphi 0, %s73
      %s91 = sphi 0, %s91
      %s93 = sphi 0, %s91
      %s94 = sphi 0, %s93
      %s108 = sphi 0, %s94
      %s112 = sphi 0, %s112
      %s114 = sphi 0, %s112
      %s115 = sphi 0, %s114
      %s129 = sphi 0, %s115
      %s135 = sphi 0, %s137
      %s138 = sphi 0, %s135
      %s139 = sphi 0, %s138
      %s155 = sphi 0, %s139
    $region4: #{tpu_custom_call.1} parent=1 // loop_header_branch
      %18 = sbr.rel (%p16) target = $region8
    $region5: #{tpu_custom_call.1} parent=1 // loop_body
      %s20 = ssub.s32 %s15, 1
      %s21 = ssub.s32 %s15, 2
      %s22 = sadd.s32 %s15, 1
      %s23 = ssub.s32 %s15, %s22
      %p24 = scmp.eq.s32.totalorder %s23, 0
      %s26 = sadd.s32 %s25, 1
      %s27 = scalar_select %p24, %s25, %s26
      %p30 = pneg %p24
      %p31 = scmp.eq.s32.totalorder %s15, 1
      %p32 = por %p30, %p31
      %p33 = scmp.ne.s32.totalorder %s25, %s28
      %p34 = scmp.eq.s32.totalorder %s15, 0
      %p35 = por %p33, %p34
      %p36 = scmp.ne.s32.totalorder %s25, %s28
      %p37 = scmp.eq.s32.totalorder %s20, 1
      %p38 = por %p36, %p37
      %p39 = scmp.ne.s32.totalorder %s28, %s29
      %p40 = scmp.eq.s32.totalorder %s20, 0
      %p41 = por %p39, %p40
      %p42 = scmp.ne.s32.totalorder %s28, %s29
      %p43 = scmp.eq.s32.totalorder %s21, 1
      %p44 = por %p42, %p43
      %p46 = scmp.ne.s32.totalorder %s29, %s45
      %p47 = scmp.eq.s32.totalorder %s21, 0
      %p48 = por %p46, %p47
      %s50 = sadd.s32 %s49, 1
      %p53 = scmp.eq.s32.totalorder %s15, 1
      %p54 = scmp.ne.s32.totalorder %s49, %s51
      %p55 = scmp.eq.s32.totalorder %s15, 0
      %p56 = por %p54, %p55
      %p57 = scmp.ne.s32.totalorder %s49, %s51
      %p58 = scmp.eq.s32.totalorder %s20, 1
      %p59 = por %p57, %p58
      %p60 = scmp.ne.s32.totalorder %s51, %s52
      %p61 = scmp.eq.s32.totalorder %s20, 0
      %p62 = por %p60, %p61
      %p63 = scmp.ne.s32.totalorder %s51, %s52
      %p64 = scmp.eq.s32.totalorder %s21, 1
      %p65 = por %p63, %p64
      %p67 = scmp.ne.s32.totalorder %s52, %s66
      %p68 = scmp.eq.s32.totalorder %s21, 0
      %p69 = por %p67, %p68
      %s71 = sadd.s32 %s70, 1
      %p74 = scmp.eq.s32.totalorder %s15, 1
      %p75 = scmp.ne.s32.totalorder %s70, %s72
      %p76 = scmp.eq.s32.totalorder %s15, 0
      %p77 = por %p75, %p76
      %p78 = scmp.ne.s32.totalorder %s70, %s72
      %p79 = scmp.eq.s32.totalorder %s20, 1
      %p80 = por %p78, %p79
      %p81 = scmp.ne.s32.totalorder %s72, %s73
      %p82 = scmp.eq.s32.totalorder %s20, 0
      %p83 = por %p81, %p82
      %p84 = scmp.ne.s32.totalorder %s72, %s73
      %p85 = scmp.eq.s32.totalorder %s21, 1
      %p86 = por %p84, %p85
      %p88 = scmp.ne.s32.totalorder %s73, %s87
      %p89 = scmp.eq.s32.totalorder %s21, 0
      %p90 = por %p88, %p89
      %s92 = sadd.s32 %s91, 1
      %p95 = scmp.eq.s32.totalorder %s15, 1
      %p96 = scmp.ne.s32.totalorder %s91, %s93
      %p97 = scmp.eq.s32.totalorder %s15, 0
      %p98 = por %p96, %p97
      %p99 = scmp.ne.s32.totalorder %s91, %s93
      %p100 = scmp.eq.s32.totalorder %s20, 1
      %p101 = por %p99, %p100
      %p102 = scmp.ne.s32.totalorder %s93, %s94
      %p103 = scmp.eq.s32.totalorder %s20, 0
      %p104 = por %p102, %p103
      %p105 = scmp.ne.s32.totalorder %s93, %s94
      %p106 = scmp.eq.s32.totalorder %s21, 1
      %p107 = por %p105, %p106
      %p109 = scmp.ne.s32.totalorder %s94, %s108
      %p110 = scmp.eq.s32.totalorder %s21, 0
      %p111 = por %p109, %p110
      %s113 = sadd.s32 %s112, 1
      %p116 = scmp.eq.s32.totalorder %s15, 1
      %p117 = scmp.ne.s32.totalorder %s112, %s114
      %p118 = scmp.eq.s32.totalorder %s15, 0
      %p119 = por %p117, %p118
      %p120 = scmp.ne.s32.totalorder %s112, %s114
      %p121 = scmp.eq.s32.totalorder %s20, 1
      %p122 = por %p120, %p121
      %p123 = scmp.ne.s32.totalorder %s114, %s115
      %p124 = scmp.eq.s32.totalorder %s20, 0
      %p125 = por %p123, %p124
      %p126 = scmp.ne.s32.totalorder %s114, %s115
      %p127 = scmp.eq.s32.totalorder %s21, 1
      %p128 = por %p126, %p127
      %p130 = scmp.ne.s32.totalorder %s115, %s129
      %p131 = scmp.eq.s32.totalorder %s21, 0
      %p132 = por %p130, %p131
      %s133 = ssub.s32 %s15, %s22
      %p134 = scmp.eq.s32.totalorder %s133, 0
      %s136 = sadd.s32 %s135, 1
      %s137 = scalar_select %p134, %s135, %s136
      %p140 = pneg %p134
      %p141 = scmp.eq.s32.totalorder %s15, 1
      %p142 = por %p140, %p141
      %p143 = scmp.ne.s32.totalorder %s135, %s138
      %p144 = scmp.eq.s32.totalorder %s15, 0
      %p145 = por %p143, %p144
      %p146 = scmp.ne.s32.totalorder %s135, %s138
      %p147 = scmp.eq.s32.totalorder %s20, 1
      %p148 = por %p146, %p147
      %p149 = scmp.ne.s32.totalorder %s138, %s139
      %p150 = scmp.eq.s32.totalorder %s20, 0
      %p151 = por %p149, %p150
      %p152 = scmp.ne.s32.totalorder %s138, %s139
      %p153 = scmp.eq.s32.totalorder %s21, 1
      %p154 = por %p152, %p153
      %p156 = scmp.ne.s32.totalorder %s139, %s155
      %p157 = scmp.eq.s32.totalorder %s21, 0
      %p158 = por %p156, %p157
      %p159 = scmp.le.s32.totalorder 1, %s15
      %p160 = scmp.lt.s32.totalorder %s15, 3
      %p161 = pnand %p159, %p160
      %p162 = pneg %p161
      // Predicated region
      $region9: #{tpu_custom_call.1} parent=5 // pred_check
        _
      $region10: #{tpu_custom_call.1} parent=5 // pred_check_branch
        %164 = sbr.rel (%p161) target = $region12
      $region11: #{tpu_custom_call.1} parent=5 // pred_region
        %s165 = ssub.s32 %s15, 1
        // Predicated region
        $region13: #{tpu_custom_call.1} parent=11 // pred_check
          %p166 = pneg %p62
        $region14: #{tpu_custom_call.1} parent=11 // pred_check_branch
          %168 = sbr.rel (%p166) target = $region16
        $region15: #{tpu_custom_call.1} parent=11 // pred_region
          _
        $region16: #{tpu_custom_call.1} parent=11 // pred_fallthru
          _
        // Predicated region
        $region17: #{tpu_custom_call.1} parent=11 // pred_check
          %p169 = pneg %p83
        $region18: #{tpu_custom_call.1} parent=11 // pred_check_branch
          %171 = sbr.rel (%p169) target = $region20
        $region19: #{tpu_custom_call.1} parent=11 // pred_region
          _
        $region20: #{tpu_custom_call.1} parent=11 // pred_fallthru
          _
        // Predicated region
        $region21: #{tpu_custom_call.1} parent=11 // pred_check
          %p172 = pneg %p104
        $region22: #{tpu_custom_call.1} parent=11 // pred_check_branch
          %174 = sbr.rel (%p172) target = $region24
        $region23: #{tpu_custom_call.1} parent=11 // pred_region
          _
        $region24: #{tpu_custom_call.1} parent=11 // pred_fallthru
          _
        // Predicated region
        $region25: #{tpu_custom_call.1} parent=11 // pred_check
          %p175 = pneg %p125
        $region26: #{tpu_custom_call.1} parent=11 // pred_check_branch
          %177 = sbr.rel (%p175) target = $region28
        $region27: #{tpu_custom_call.1} parent=11 // pred_region
          _
        $region28: #{tpu_custom_call.1} parent=11 // pred_fallthru
          _
      $region12: #{tpu_custom_call.1} parent=5 // pred_fallthru
        _
      %p178 = scmp.lt.s32.totalorder %s15, 2
      // Predicated region
      $region29: #{tpu_custom_call.1} parent=5 // pred_check
        %p179 = pneg %p178
      $region30: #{tpu_custom_call.1} parent=5 // pred_check_branch
        %181 = sbr.rel (%p179) target = $region32
      $region31: #{tpu_custom_call.1} parent=5 // pred_region
        // Predicated region
        $region33: #{tpu_custom_call.1} parent=31 // pred_check
          %p182 = pneg %p35
        $region34: #{tpu_custom_call.1} parent=31 // pred_check_branch
          %184 = sbr.rel (%p182) target = $region36
        $region35: #{tpu_custom_call.1} parent=31 // pred_region
          %s185 = smul.u32 16, %s15
          %p186 = scmp.lt.s32.totalorder %s185, 31
          %s187 = scalar_select %p186, %s185, 31
          %s188 = smul.addr %s187, 8
          %s189 = scalar_lea.vmem %s0, %s188
          %s190 = smul.u32 16, %s15
        $region36: #{tpu_custom_call.1} parent=31 // pred_fallthru
          _
      $region32: #{tpu_custom_call.1} parent=5 // pred_fallthru
        _
      %p191 = scmp.le.s32.totalorder 1, %s15
      %p192 = scmp.lt.s32.totalorder %s15, 3
      %p193 = pnand %p191, %p192
      %p194 = pneg %p193
      // Predicated region
      $region37: #{tpu_custom_call.1} parent=5 // pred_check
        _
      $region38: #{tpu_custom_call.1} parent=5 // pred_check_branch
        %196 = sbr.rel (%p193) target = $region40
      $region39: #{tpu_custom_call.1} parent=5 // pred_region
        %s197 = ssub.s32 %s15, 1
        %s198 = smul.u32 16, %s20
        %p199 = scmp.lt.s32.totalorder %s198, 31
        %s200 = scalar_select %p199, %s198, 31
        %s201 = smul.addr %s200, 8
        %s202 = scalar_lea.vmem %s0, %s201
        %p203 = pneg %p41
        %p204 = pneg %p38
        %p205 = pneg %p62
        %p206 = pneg %p59
        %p207 = pneg %p83
        %p208 = pneg %p80
        %p209 = pneg %p104
        %p210 = pneg %p101
        %p211 = pneg %p125
        %p212 = pneg %p122
        %p213 = pneg %p151
        %p214 = pneg %p148
        %s215 = sand.u32 %s138, 1
        %s216 = scalar_lea.sflag [#allocation4], %s215
        %s217 = sand.u32 %s138, 1
        %s218 = scalar_lea.vmem [#allocation3], %s217
        %s219 = smul.u32 16, %s20
        %p220 = scmp.lt.s32.totalorder %s219, 31
        %s221 = scalar_select %p220, %s219, 31
        %s222 = smul.addr %s221, 8
        %s223 = scalar_lea.vmem %s0, %s222
        %s224 = smul.u32 16, %s20
        %v225 = vld [vmem:[%s223] sm:$0xff]
        %v226 = vld [vmem:[%s223 + $0x8] sm:$0xff]
        %v227 = vld [vmem:[%s223 + $0x10] sm:$0xff]
        %v228 = vld [vmem:[%s223 + $0x18] sm:$0xff]
        %v229 = vld [vmem:[%s223 + $0x20] sm:$0xff]
        %v230 = vld [vmem:[%s223 + $0x28] sm:$0xff]
        %v231 = vld [vmem:[%s223 + $0x30] sm:$0xff]
        %v232 = vld [vmem:[%s223 + $0x38] sm:$0xff]
        %v233 = vld [vmem:[%s223 + $0x40] sm:$0xff]
        %v234 = vld [vmem:[%s223 + $0x48] sm:$0xff]
        %v235 = vld [vmem:[%s223 + $0x50] sm:$0xff]
        %v236 = vld [vmem:[%s223 + $0x58] sm:$0xff]
        %v237 = vld [vmem:[%s223 + $0x60] sm:$0xff]
        %v238 = vld [vmem:[%s223 + $0x68] sm:$0xff]
        %v239 = vld [vmem:[%s223 + $0x70] sm:$0xff]
        %v240 = vld [vmem:[%s223 + $0x78] sm:$0xff]
        %v241 = vld [vmem:[%s1] sm:$0xff]
        %v242 = vld [vmem:[%s1 + $0x8] sm:$0xff]
        %v243 = vld [vmem:[%s1 + $0x10] sm:$0xff]
        %v244 = vld [vmem:[%s1 + $0x18] sm:$0xff]
        %v245 = vld [vmem:[%s2] sm:$0x1]
        %v247 = vlaneseq
        %v248 = vshrl.u32 %v247, 7
        %v249 = vsub.s32 0, %v248
        %v250 = vrot.slane %v245, %v249
        %vm252 = vcmask 261120
        %v254 = vsel %vm252, %v225, 0
        %v257 = vsel %vm252, %v226, 0
        %v260 = vsel %vm252, %v227, 0
        %v263 = vsel %vm252, %v228, 0
        %v266 = vsel %vm252, %v229, 0
        %v269 = vsel %vm252, %v230, 0
        %v272 = vsel %vm252, %v231, 0
        %v275 = vsel %vm252, %v232, 0
        %v278 = vsel %vm252, %v233, 0
        %v281 = vsel %vm252, %v234, 0
        %v284 = vsel %vm252, %v235, 0
        %v287 = vsel %vm252, %v236, 0
        %v290 = vsel %vm252, %v237, 0
        %v293 = vsel %vm252, %v238, 0
        %v296 = vsel %vm252, %v239, 0
        %v299 = vsel %vm252, %v240, 0
        %301 = vmatprep.subr.mxu0 0.0
        %302 = vmatpush1.msra.mxu0 0.0
        %303 = vmatprep.subr.mxu0 0.0
        %304 = vmatpush1.msra.mxu0 0.0
        %305 = vmatprep.subr.mxu0 0.0
        %306 = vmatpush1.msra.mxu0 0.0
        %307 = vmatprep.subr.mxu0 0.0
        %308 = vmatpush1.msra.mxu0 0.0
        %309 = vmatprep.subr.mxu0 0.0
        %310 = vmatpush1.msra.mxu0 0.0
        %311 = vmatprep.subr.mxu0 0.0
        %312 = vmatpush1.msra.mxu0 0.0
        %313 = vmatprep.subr.mxu0 0.0
        %314 = vmatpush1.msra.mxu0 0.0
        %315 = vmatprep.subr.mxu0 0.0
        %316 = vmatpush1.msra.mxu0 0.0
        %317 = vmatprep.subr.mxu0 0.0
        %318 = vmatpush1.msra.mxu0 0.0
        %319 = vmatprep.subr.mxu0 0.0
        %320 = vmatpush1.msra.mxu0 0.0
        %321 = vmatprep.subr.mxu0 0.0
        %322 = vmatpush1.msra.mxu0 0.0
        %323 = vmatprep.subr.mxu0 0.0
        %324 = vmatpush1.msra.mxu0 0.0
        %325 = vmatprep.subr.mxu0 0.0
        %326 = vmatpush1.msra.mxu0 %v244
        %327 = vmatprep.subr.mxu0 0.0
        %328 = vmatpush1.msra.mxu0 %v243
        %329 = vmatprep.subr.mxu0 0.0
        %330 = vmatpush1.msra.mxu0 %v242
        %331 = vmatprep.subr.mxu0 0.0
        %332 = vmatpush1.msra.mxu0 %v241
        %333 = vmatprep.subr.mxu0 0.0
        %334 = vmatpush2.msra.mxu0 0.0
        %335 = vmatprep.subr.mxu0 0.0
        %336 = vmatpush2.msra.mxu0 0.0
        %337 = vmatprep.subr.mxu0 0.0
        %338 = vmatpush2.msra.mxu0 0.0
        %339 = vmatprep.subr.mxu0 0.0
        %340 = vmatpush2.msra.mxu0 0.0
        %341 = vmatprep.subr.mxu0 0.0
        %342 = vmatpush2.msra.mxu0 0.0
        %343 = vmatprep.subr.mxu0 0.0
        %344 = vmatpush2.msra.mxu0 0.0
        %345 = vmatprep.subr.mxu0 0.0
        %346 = vmatpush2.msra.mxu0 0.0
        %347 = vmatprep.subr.mxu0 0.0
        %348 = vmatpush2.msra.mxu0 0.0
        %349 = vmatprep.subr.mxu0 0.0
        %350 = vmatpush2.msra.mxu0 0.0
        %351 = vmatprep.subr.mxu0 0.0
        %352 = vmatpush2.msra.mxu0 0.0
        %353 = vmatprep.subr.mxu0 0.0
        %354 = vmatpush2.msra.mxu0 0.0
        %355 = vmatprep.subr.mxu0 0.0
        %356 = vmatpush2.msra.mxu0 0.0
        %357 = vmatprep.subr.mxu0 0.0
        %358 = vmatpush2.msra.mxu0 0.0
        %359 = vmatprep.subr.mxu0 0.0
        %360 = vmatpush2.msra.mxu0 0.0
        %361 = vmatprep.subr.mxu0 0.0
        %362 = vmatpush2.msra.mxu0 0.0
        %363 = vmatprep.subr.mxu0 0.0
        %364 = vmatpush2.msra.mxu0 0.0
        %365 = vmatprep.mubr.f32.mxu0 0.0
        %366 = vmatmul.mubr.f32.gmra.mxu0 %v254
        %v367 = vpop.f32.mrf.mxu0
        %v368 = vadd.f32 %v250, %v367
        %v369 = vpop.f32.mrf.mxu0
        %370 = vmatprep.mubr.f32.mxu0 0.0
        %371 = vmatmul.mubr.f32.gmra.mxu0 %v257
        %v372 = vpop.f32.mrf.mxu0
        %v373 = vadd.f32 %v250, %v372
        %v374 = vpop.f32.mrf.mxu0
        %375 = vmatprep.mubr.f32.mxu0 0.0
        %376 = vmatmul.mubr.f32.gmra.mxu0 %v260
        %v377 = vpop.f32.mrf.mxu0
        %v378 = vadd.f32 %v250, %v377
        %v379 = vpop.f32.mrf.mxu0
        %380 = vmatprep.mubr.f32.mxu0 0.0
        %381 = vmatmul.mubr.f32.gmra.mxu0 %v263
        %v382 = vpop.f32.mrf.mxu0
        %v383 = vadd.f32 %v250, %v382
        %v384 = vpop.f32.mrf.mxu0
        %385 = vmatprep.mubr.f32.mxu0 0.0
        %386 = vmatmul.mubr.f32.gmra.mxu0 %v266
        %v387 = vpop.f32.mrf.mxu0
        %v388 = vadd.f32 %v250, %v387
        %v389 = vpop.f32.mrf.mxu0
        %390 = vmatprep.mubr.f32.mxu0 0.0
        %391 = vmatmul.mubr.f32.gmra.mxu0 %v269
        %v392 = vpop.f32.mrf.mxu0
        %v393 = vadd.f32 %v250, %v392
        %v394 = vpop.f32.mrf.mxu0
        %395 = vmatprep.mubr.f32.mxu0 0.0
        %396 = vmatmul.mubr.f32.gmra.mxu0 %v272
        %v397 = vpop.f32.mrf.mxu0
        %v398 = vadd.f32 %v250, %v397
        %v399 = vpop.f32.mrf.mxu0
        %400 = vmatprep.mubr.f32.mxu0 0.0
        %401 = vmatmul.mubr.f32.gmra.mxu0 %v275
        %v402 = vpop.f32.mrf.mxu0
        %v403 = vadd.f32 %v250, %v402
        %v404 = vpop.f32.mrf.mxu0
        %405 = vmatprep.mubr.f32.mxu0 0.0
        %406 = vmatmul.mubr.f32.gmra.mxu0 %v278
        %v407 = vpop.f32.mrf.mxu0
        %v408 = vadd.f32 %v250, %v407
        %v409 = vpop.f32.mrf.mxu0
        %410 = vmatprep.mubr.f32.mxu0 0.0
        %411 = vmatmul.mubr.f32.gmra.mxu0 %v281
        %v412 = vpop.f32.mrf.mxu0
        %v413 = vadd.f32 %v250, %v412
        %v414 = vpop.f32.mrf.mxu0
        %415 = vmatprep.mubr.f32.mxu0 0.0
        %416 = vmatmul.mubr.f32.gmra.mxu0 %v284
        %v417 = vpop.f32.mrf.mxu0
        %v418 = vadd.f32 %v250, %v417
        %v419 = vpop.f32.mrf.mxu0
        %420 = vmatprep.mubr.f32.mxu0 0.0
        %421 = vmatmul.mubr.f32.gmra.mxu0 %v287
        %v422 = vpop.f32.mrf.mxu0
        %v423 = vadd.f32 %v250, %v422
        %v424 = vpop.f32.mrf.mxu0
        %425 = vmatprep.mubr.f32.mxu0 0.0
        %426 = vmatmul.mubr.f32.gmra.mxu0 %v290
        %v427 = vpop.f32.mrf.mxu0
        %v428 = vadd.f32 %v250, %v427
        %v429 = vpop.f32.mrf.mxu0
        %430 = vmatprep.mubr.f32.mxu0 0.0
        %431 = vmatmul.mubr.f32.gmra.mxu0 %v293
        %v432 = vpop.f32.mrf.mxu0
        %v433 = vadd.f32 %v250, %v432
        %v434 = vpop.f32.mrf.mxu0
        %435 = vmatprep.mubr.f32.mxu0 0.0
        %436 = vmatmul.mubr.f32.gmra.mxu0 %v296
        %v437 = vpop.f32.mrf.mxu0
        %v438 = vadd.f32 %v250, %v437
        %v439 = vpop.f32.mrf.mxu0
        %440 = vmatprep.mubr.f32.mxu0 0.0
        %441 = vmatmul.mubr.f32.gmra.mxu0 %v299
        %v442 = vpop.f32.mrf.mxu0
        %v443 = vadd.f32 %v250, %v442
        %v444 = vpop.f32.mrf.mxu0
        %445 = vdwg.mxu0
        %v446 = vmax.f32 %v368, 0.0
        %v447 = vmax.f32 %v373, 0.0
        %v448 = vmax.f32 %v378, 0.0
        %v449 = vmax.f32 %v383, 0.0
        %v450 = vmax.f32 %v388, 0.0
        %v451 = vmax.f32 %v393, 0.0
        %v452 = vmax.f32 %v398, 0.0
        %v453 = vmax.f32 %v403, 0.0
        %v454 = vmax.f32 %v408, 0.0
        %v455 = vmax.f32 %v413, 0.0
        %v456 = vmax.f32 %v418, 0.0
        %v457 = vmax.f32 %v423, 0.0
        %v458 = vmax.f32 %v428, 0.0
        %v459 = vmax.f32 %v433, 0.0
        %v460 = vmax.f32 %v438, 0.0
        %v461 = vmax.f32 %v443, 0.0
        %v462 = vld [vmem:[%s3] sm:$0x1]
        %v464 = vlaneseq
        %v465 = vshrl.u32 %v464, 7
        %v466 = vsub.s32 0, %v465
        %v467 = vrot.slane %v462, %v466
        %v469 = vmul.f32 %v446, %v467
        %v470 = vmul.f32 %v447, %v467
        %v471 = vmul.f32 %v448, %v467
        %v472 = vmul.f32 %v449, %v467
        %v473 = vmul.f32 %v450, %v467
        %v474 = vmul.f32 %v451, %v467
        %v475 = vmul.f32 %v452, %v467
        %v476 = vmul.f32 %v453, %v467
        %v477 = vmul.f32 %v454, %v467
        %v478 = vmul.f32 %v455, %v467
        %v479 = vmul.f32 %v456, %v467
        %v480 = vmul.f32 %v457, %v467
        %v481 = vmul.f32 %v458, %v467
        %v482 = vmul.f32 %v459, %v467
        %v483 = vmul.f32 %v460, %v467
        %v484 = vmul.f32 %v461, %v467
        %vm485 = vcmask 523264
        %v486 = vsel %vm485, %v469, 0.0
        %487 = vadd.xlane.f32.xlu0 %v486
        %v488 = vpop.xlane.xlu0 %487
        %v489 = vsel %vm485, %v470, 0.0
        %490 = vadd.xlane.f32.xlu0 %v489
        %v491 = vpop.xlane.xlu0 %490
        %v492 = vsel %vm485, %v471, 0.0
        %493 = vadd.xlane.f32.xlu0 %v492
        %v494 = vpop.xlane.xlu0 %493
        %v495 = vsel %vm485, %v472, 0.0
        %496 = vadd.xlane.f32.xlu0 %v495
        %v497 = vpop.xlane.xlu0 %496
        %v498 = vsel %vm485, %v473, 0.0
        %499 = vadd.xlane.f32.xlu0 %v498
        %v500 = vpop.xlane.xlu0 %499
        %v501 = vsel %vm485, %v474, 0.0
        %502 = vadd.xlane.f32.xlu0 %v501
        %v503 = vpop.xlane.xlu0 %502
        %v504 = vsel %vm485, %v475, 0.0
        %505 = vadd.xlane.f32.xlu0 %v504
        %v506 = vpop.xlane.xlu0 %505
        %v507 = vsel %vm485, %v476, 0.0
        %508 = vadd.xlane.f32.xlu0 %v507
        %v509 = vpop.xlane.xlu0 %508
        %v510 = vsel %vm485, %v477, 0.0
        %511 = vadd.xlane.f32.xlu0 %v510
        %v512 = vpop.xlane.xlu0 %511
        %v513 = vsel %vm485, %v478, 0.0
        %514 = vadd.xlane.f32.xlu0 %v513
        %v515 = vpop.xlane.xlu0 %514
        %v516 = vsel %vm485, %v479, 0.0
        %517 = vadd.xlane.f32.xlu0 %v516
        %v518 = vpop.xlane.xlu0 %517
        %v519 = vsel %vm485, %v480, 0.0
        %520 = vadd.xlane.f32.xlu0 %v519
        %v521 = vpop.xlane.xlu0 %520
        %v522 = vsel %vm485, %v481, 0.0
        %523 = vadd.xlane.f32.xlu0 %v522
        %v524 = vpop.xlane.xlu0 %523
        %v525 = vsel %vm485, %v482, 0.0
        %526 = vadd.xlane.f32.xlu0 %v525
        %v527 = vpop.xlane.xlu0 %526
        %v528 = vsel %vm485, %v483, 0.0
        %529 = vadd.xlane.f32.xlu0 %v528
        %v530 = vpop.xlane.xlu0 %529
        %v531 = vsel %vm485, %v484, 0.0
        %532 = vadd.xlane.f32.xlu0 %v531
        %v533 = vpop.xlane.xlu0 %532
        %s534 = sld [smem:[#allocation2]]
        %v535 = vstv %s534
        %v536 = vadd.f32 %v488, %v535
        %v537 = vadd.f32 %v491, %v535
        %v538 = vadd.f32 %v494, %v535
        %v539 = vadd.f32 %v497, %v535
        %v540 = vadd.f32 %v500, %v535
        %v541 = vadd.f32 %v503, %v535
        %v542 = vadd.f32 %v506, %v535
        %v543 = vadd.f32 %v509, %v535
        %v544 = vadd.f32 %v512, %v535
        %v545 = vadd.f32 %v515, %v535
        %v546 = vadd.f32 %v518, %v535
        %v547 = vadd.f32 %v521, %v535
        %v548 = vadd.f32 %v524, %v535
        %v549 = vadd.f32 %v527, %v535
        %v550 = vadd.f32 %v530, %v535
        %v551 = vadd.f32 %v533, %v535
        %v552 = vxor.u32 %v536, 2147483648
        %v553 = vxor.u32 %v537, 2147483648
        %v554 = vxor.u32 %v538, 2147483648
        %v555 = vxor.u32 %v539, 2147483648
        %v556 = vxor.u32 %v540, 2147483648
        %v557 = vxor.u32 %v541, 2147483648
        %v558 = vxor.u32 %v542, 2147483648
        %v559 = vxor.u32 %v543, 2147483648
        %v560 = vxor.u32 %v544, 2147483648
        %v561 = vxor.u32 %v545, 2147483648
        %v562 = vxor.u32 %v546, 2147483648
        %v563 = vxor.u32 %v547, 2147483648
        %v564 = vxor.u32 %v548, 2147483648
        %v565 = vxor.u32 %v549, 2147483648
        %v566 = vxor.u32 %v550, 2147483648
        %v567 = vxor.u32 %v551, 2147483648
        %v568 = vmul.f32 %v552, 1.442695
        %v569 = vpow.pop %v568
        %v570 = vmul.f32 %v553, 1.442695
        %v571 = vpow.pop %v570
        %v572 = vmul.f32 %v554, 1.442695
        %v573 = vpow.pop %v572
        %v574 = vmul.f32 %v555, 1.442695
        %v575 = vpow.pop %v574
        %v576 = vmul.f32 %v556, 1.442695
        %v577 = vpow.pop %v576
        %v578 = vmul.f32 %v557, 1.442695
        %v579 = vpow.pop %v578
        %v580 = vmul.f32 %v558, 1.442695
        %v581 = vpow.pop %v580
        %v582 = vmul.f32 %v559, 1.442695
        %v583 = vpow.pop %v582
        %v584 = vmul.f32 %v560, 1.442695
        %v585 = vpow.pop %v584
        %v586 = vmul.f32 %v561, 1.442695
        %v587 = vpow.pop %v586
        %v588 = vmul.f32 %v562, 1.442695
        %v589 = vpow.pop %v588
        %v590 = vmul.f32 %v563, 1.442695
        %v591 = vpow.pop %v590
        %v592 = vmul.f32 %v564, 1.442695
        %v593 = vpow.pop %v592
        %v594 = vmul.f32 %v565, 1.442695
        %v595 = vpow.pop %v594
        %v596 = vmul.f32 %v566, 1.442695
        %v597 = vpow.pop %v596
        %v598 = vmul.f32 %v567, 1.442695
        %v599 = vpow.pop %v598
        %v600 = vadd.f32 %v569, 1.0
        %v601 = vadd.f32 %v571, 1.0
        %v602 = vadd.f32 %v573, 1.0
        %v603 = vadd.f32 %v575, 1.0
        %v604 = vadd.f32 %v577, 1.0
        %v605 = vadd.f32 %v579, 1.0
        %v606 = vadd.f32 %v581, 1.0
        %v607 = vadd.f32 %v583, 1.0
        %v608 = vadd.f32 %v585, 1.0
        %v609 = vadd.f32 %v587, 1.0
        %v610 = vadd.f32 %v589, 1.0
        %v611 = vadd.f32 %v591, 1.0
        %v612 = vadd.f32 %v593, 1.0
        %v613 = vadd.f32 %v595, 1.0
        %v614 = vadd.f32 %v597, 1.0
        %v615 = vadd.f32 %v599, 1.0
        %v616 = vrcp.pop %v600
        %v617 = vmul.f32 1.0, %v616
        %v618 = vrcp.pop %v601
        %v619 = vmul.f32 1.0, %v618
        %v620 = vrcp.pop %v602
        %v621 = vmul.f32 1.0, %v620
        %v622 = vrcp.pop %v603
        %v623 = vmul.f32 1.0, %v622
        %v624 = vrcp.pop %v604
        %v625 = vmul.f32 1.0, %v624
        %v626 = vrcp.pop %v605
        %v627 = vmul.f32 1.0, %v626
        %v628 = vrcp.pop %v606
        %v629 = vmul.f32 1.0, %v628
        %v630 = vrcp.pop %v607
        %v631 = vmul.f32 1.0, %v630
        %v632 = vrcp.pop %v608
        %v633 = vmul.f32 1.0, %v632
        %v634 = vrcp.pop %v609
        %v635 = vmul.f32 1.0, %v634
        %v636 = vrcp.pop %v610
        %v637 = vmul.f32 1.0, %v636
        %v638 = vrcp.pop %v611
        %v639 = vmul.f32 1.0, %v638
        %v640 = vrcp.pop %v612
        %v641 = vmul.f32 1.0, %v640
        %v642 = vrcp.pop %v613
        %v643 = vmul.f32 1.0, %v642
        %v644 = vrcp.pop %v614
        %v645 = vmul.f32 1.0, %v644
        %v646 = vrcp.pop %v615
        %v647 = vmul.f32 1.0, %v646
        %v664 = vlaneseq
        %v665 = vand.u32 %v664, 127
        %v666 = vlaneseq
        %v667 = vshrl.u32 %v666, 7
        %v668 = vsub.s32 %v665, %v667
        %v669 = vrot.slane %v617, %v668
        %v670 = vadd.s32 %v665, 4294967288
        %v671 = vlaneseq
        %v672 = vshrl.u32 %v671, 7
        %v673 = vsub.s32 %v670, %v672
        %v674 = vrot.slane %v619, %v673
        %vm675 = vcmask 130112
        %v676 = vsel %vm675, %v674, %v669
        %v677 = vadd.s32 %v665, 4294967280
        %v678 = vlaneseq
        %v679 = vshrl.u32 %v678, 7
        %v680 = vsub.s32 %v677, %v679
        %v681 = vrot.slane %v621, %v680
        %vm682 = vcmask 195712
        %v683 = vsel %vm682, %v681, %v676
        %v684 = vadd.s32 %v665, 4294967272
        %v685 = vlaneseq
        %v686 = vshrl.u32 %v685, 7
        %v687 = vsub.s32 %v684, %v686
        %v688 = vrot.slane %v623, %v687
        %vm689 = vcmask 261312
        %v690 = vsel %vm689, %v688, %v683
        %v691 = vadd.s32 %v665, 4294967264
        %v692 = vlaneseq
        %v693 = vshrl.u32 %v692, 7
        %v694 = vsub.s32 %v691, %v693
        %v695 = vrot.slane %v625, %v694
        %vm696 = vcmask 326912
        %v697 = vsel %vm696, %v695, %v690
        %v698 = vadd.s32 %v665, 4294967256
        %v699 = vlaneseq
        %v700 = vshrl.u32 %v699, 7
        %v701 = vsub.s32 %v698, %v700
        %v702 = vrot.slane %v627, %v701
        %vm703 = vcmask 392512
        %v704 = vsel %vm703, %v702, %v697
        %v705 = vadd.s32 %v665, 4294967248
        %v706 = vlaneseq
        %v707 = vshrl.u32 %v706, 7
        %v708 = vsub.s32 %v705, %v707
        %v709 = vrot.slane %v629, %v708
        %vm710 = vcmask 458112
        %v711 = vsel %vm710, %v709, %v704
        %v712 = vadd.s32 %v665, 4294967240
        %v713 = vlaneseq
        %v714 = vshrl.u32 %v713, 7
        %v715 = vsub.s32 %v712, %v714
        %v716 = vrot.slane %v631, %v715
        %vm717 = vcmask 523712
        %v718 = vsel %vm717, %v716, %v711
        %v719 = vadd.s32 %v665, 4294967232
        %v720 = vlaneseq
        %v721 = vshrl.u32 %v720, 7
        %v722 = vsub.s32 %v719, %v721
        %v723 = vrot.slane %v633, %v722
        %vm724 = vcmask 589312
        %v725 = vsel %vm724, %v723, %v718
        %v726 = vadd.s32 %v665, 4294967224
        %v727 = vlaneseq
        %v728 = vshrl.u32 %v727, 7
        %v729 = vsub.s32 %v726, %v728
        %v730 = vrot.slane %v635, %v729
        %vm731 = vcmask 654912
        %v732 = vsel %vm731, %v730, %v725
        %v733 = vadd.s32 %v665, 4294967216
        %v734 = vlaneseq
        %v735 = vshrl.u32 %v734, 7
        %v736 = vsub.s32 %v733, %v735
        %v737 = vrot.slane %v637, %v736
        %vm738 = vcmask 720512
        %v739 = vsel %vm738, %v737, %v732
        %v740 = vadd.s32 %v665, 4294967208
        %v741 = vlaneseq
        %v742 = vshrl.u32 %v741, 7
        %v743 = vsub.s32 %v740, %v742
        %v744 = vrot.slane %v639, %v743
        %vm745 = vcmask 786112
        %v746 = vsel %vm745, %v744, %v739
        %v747 = vadd.s32 %v665, 4294967200
        %v748 = vlaneseq
        %v749 = vshrl.u32 %v748, 7
        %v750 = vsub.s32 %v747, %v749
        %v751 = vrot.slane %v641, %v750
        %vm752 = vcmask 851712
        %v753 = vsel %vm752, %v751, %v746
        %v754 = vadd.s32 %v665, 4294967192
        %v755 = vlaneseq
        %v756 = vshrl.u32 %v755, 7
        %v757 = vsub.s32 %v754, %v756
        %v758 = vrot.slane %v643, %v757
        %vm759 = vcmask 917312
        %v760 = vsel %vm759, %v758, %v753
        %v761 = vadd.s32 %v665, 4294967184
        %v762 = vlaneseq
        %v763 = vshrl.u32 %v762, 7
        %v764 = vsub.s32 %v761, %v763
        %v765 = vrot.slane %v645, %v764
        %vm766 = vcmask 982912
        %v767 = vsel %vm766, %v765, %v760
        %v768 = vadd.s32 %v665, 4294967176
        %v769 = vlaneseq
        %v770 = vshrl.u32 %v769, 7
        %v771 = vsub.s32 %v768, %v770
        %v772 = vrot.slane %v647, %v771
        %vm773 = vcmask 1048512
        %v774 = vsel %vm773, %v772, %v767
        %776 = vst [vmem:[%s218] sm:$0x1] %v774
        %s777 = sand.u32 %s138, 1
        %s778 = scalar_lea.sflag [#allocation4], %s777
        %s779 = sand.u32 %s138, 1
        %s780 = scalar_lea.vmem [#allocation3], %s779
        // Predicated region
        $region41: #{tpu_custom_call.1} parent=39 // pred_check
          %p781 = pneg %p148
        $region42: #{tpu_custom_call.1} parent=39 // pred_check_branch
          %783 = sbr.rel (%p781) target = $region44
        $region43: #{tpu_custom_call.1} parent=39 // pred_region
          %s785 = ssub.s32 16, 16
          %786 = vsyncadd %s778, %s785
          %s787 = smul.addr %s20, 16
          %s788 = scalar_lea.hbm %s5, %s787
          %s790 = sshll.u32 %s780, 4
          %s791 = int_to_ptr.vmem [resolvable:$true] %s790
          %793 = dma.vmem_to_hbm [thread:$0]  %s791, 16, %s788, %s778
        $region44: #{tpu_custom_call.1} parent=39 // pred_fallthru
          _
      $region40: #{tpu_custom_call.1} parent=5 // pred_fallthru
        _
      %p794 = scmp.le.s32.totalorder 2, %s15
      // Predicated region
      $region45: #{tpu_custom_call.1} parent=5 // pred_check
        %p795 = pneg %p794
      $region46: #{tpu_custom_call.1} parent=5 // pred_check_branch
        %797 = sbr.rel (%p795) target = $region48
      $region47: #{tpu_custom_call.1} parent=5 // pred_region
        %s798 = ssub.s32 %s15, 2
        // Predicated region
        $region49: #{tpu_custom_call.1} parent=47 // pred_check
          %p799 = pneg %p154
        $region50: #{tpu_custom_call.1} parent=47 // pred_check_branch
          %801 = sbr.rel (%p799) target = $region52
        $region51: #{tpu_custom_call.1} parent=47 // pred_region
          %s802 = sand.u32 %s139, 1
          %s803 = scalar_lea.sflag [#allocation4], %s802
          %s804 = sand.u32 %s139, 1
          %s805 = scalar_lea.vmem [#allocation3], %s804
          %806 = dma.done %s803, 16
        $region52: #{tpu_custom_call.1} parent=47 // pred_fallthru
          _
      $region48: #{tpu_custom_call.1} parent=5 // pred_fallthru
        _
    $region6: #{tpu_custom_call.1} parent=1 // loop_footer
      %s19 = sadd.s32 1, %s15
    $region7: #{tpu_custom_call.1} parent=1 // loop_footer_branch
      %14 = sbr.rel target = $region3
    $region8: #{tpu_custom_call.1} parent=1 // loop_exit
      _
    %807 = vsyncpa [#allocation4], 1
    %s808 = scalar_lea.sflag [#allocation4], 1
    %809 = vsyncpa %s808, 1

</llo_original>
